<compile_context>
chip_gen: v7x
topology: tpu7x:2x2x1
jax: 0.10.0
libtpu: 0.0.40
codegen_flags: <defaults>
</compile_context>

<pallas_src>
import jax
import jax.numpy as jnp
from jax.experimental import pallas as pl
from jax.experimental.pallas import tpu as pltpu


# ----------------------------- kernel ---------------------------------------


def highway_kernel(xs_ref, w_ref, b_ref, o_ref):
    # One fused pre-activation for all three gates of this output-feature tile.
    # Packed column layout inside the weight block: [H | T | C], each tn wide.
    pre = (jnp.dot(xs_ref[...], w_ref[...], preferred_element_type=jnp.float32)
           + b_ref[...])                                    # [tile_b, 3*tn] f32

    tn = o_ref.shape[-1]
    dp = xs_ref.shape[-1] // 2

    h = jnp.tanh(pre[:, :tn])
    # sigmoid(z) == 0.5*(tanh(0.5*z)+1): one EUP op per element vs. exp + divide.
    t = 0.5 * (jnp.tanh(0.5 * pre[:, tn:2 * tn]) + 1.0)
    c = 0.5 * (jnp.tanh(0.5 * pre[:, 2 * tn:]) + 1.0)

    # Carry columns of s for this feature tile, sliced from the resident [x|s]
    # block (second half, 128-aligned start).
    j = pl.program_id(0)
    s_start = pl.multiple_of(dp + j * tn, 128)
    s_j = xs_ref[:, pl.ds(s_start, tn)].astype(jnp.float32)

    # dropout_p = 0.0 -> identity on t; couple=False -> independent carry gate.
    o_ref[...] = (h * t + s_j * c).astype(o_ref.dtype)


# ----------------------------- helpers ---------------------------------------


def _round_up(x, m):
    return ((x + m - 1) // m) * m


def _chip_generation():
    try:
        kind = jax.devices()[0].device_kind.lower()
    except Exception:
        kind = ""
    if "v5 lite" in kind or "v5e" in kind or "v5lite" in kind:
        return "v5e"
    if "v6" in kind:
        return "v6e"
    if "v7" in kind:
        return "v7x"
    return "unknown"


def _hw_config(dp):
    """Hardware-aware (tn, vmem_limit_bytes)."""
    gen = _chip_generation()
    if gen == "v5e":
        # 128-wide MXUs + single vst slot: tn=128 keeps the f32 epilogue small.
        return 128, 96 * 1024 * 1024
    if gen == "v6e":
        return (256 if dp % 256 == 0 else 128), 96 * 1024 * 1024
    if gen == "v7x":
        # 64 MiB physical VMEM: only use tn=256 if the double-buffered fused
        # weight slab (2*dp x 3*tn bf16, x2 buffers) stays comfortably small.
        tn = 256 if (dp % 256 == 0 and 2 * dp * 3 * 256 * 2 * 2 <= 16 * 1024 * 1024) else 128
        return tn, 48 * 1024 * 1024
    # Unknown chip: conservative.
    return (256 if dp % 256 == 0 else 128), 48 * 1024 * 1024


def _pick_tile_b(bp):
    """Largest multiple-of-16 divisor of bp (cap 512); never shrink below 16
    (bf16 min sublane tile). Megacore parallelism comes from the grid axes, not
    from cutting tile_b."""
    cap = min(bp, 512)
    cands = [t for t in range(16, cap + 1, 16) if bp % t == 0]
    if not cands:
        return bp
    big = [t for t in cands if t >= 128]
    return max(big) if big else max(cands)


# ----------------------------- packing / wrapper -----------------------------


def pack_params(params, d, *, tn=None):
    """One-time packing: pad each [d,d] weight to [dp,dp] bf16, interleave the
    three gates in tn-wide column groups, and stack the x-side weights on top of
    the s-side weights -> one fused [2*dp, 3*dp] slab.  Block j (width 3*tn)
    holds columns [W_H | W_T | W_C] of that feature tile; rows 0..dp-1 multiply
    x, rows dp..2*dp-1 multiply s."""
    dp = _round_up(max(d, 128), 128)
    tn_hw, vmem_limit = _hw_config(dp)
    if tn is None:
        tn = tn_hw
    assert dp % tn == 0 and tn % 128 == 0

    def pad_w(w):
        return jnp.zeros((dp, dp), jnp.bfloat16).at[:d, :d].set(w.astype(jnp.bfloat16))

    def pack3(ws):
        stacked = jnp.stack([pad_w(w) for w in ws])               # [3, dp, dp]
        return (stacked.reshape(3, dp, dp // tn, tn)
                .transpose(1, 2, 0, 3)                            # (row, jtile, gate, col)
                .reshape(dp, 3 * dp))

    wx = pack3([params["W_H"], params["W_T"], params["W_C"]])
    ws = pack3([params["R_H"], params["R_T"], params["R_C"]])
    w_all = jnp.concatenate([wx, ws], axis=0)                     # [2*dp, 3*dp]

    def pad_b(b):
        return jnp.zeros((dp,), jnp.float32).at[:d].set(
            b.reshape(-1).astype(jnp.float32))

    bs = jnp.stack([pad_b(params["b_H"]), pad_b(params["b_T"]), pad_b(params["b_C"])])
    b_all = bs.reshape(3, dp // tn, tn).transpose(1, 0, 2).reshape(1, 3 * dp)

    return {"W": w_all, "b": b_all, "d": d, "dp": dp, "tn": tn,
            "vmem_limit": vmem_limit}


def highway_block(x, s, packed, *, tile_b=None):
    """x, s: [B, D] float32.  packed: output of pack_params()."""
    w_all, b_all = packed["W"], packed["b"]
    d, dp, tn = packed["d"], packed["dp"], packed["tn"]

    B = x.shape[0]
    assert x.shape == (B, d) and s.shape == (B, d)

    bp = _round_up(max(B, 16), 16)
    if tile_b is None:
        tile_b = _pick_tile_b(bp)
    assert bp % tile_b == 0 and (tile_b % 16 == 0 or tile_b == bp)

    # Zero-pad and fuse activations into one bf16 operand [x | s] (full-rate MXU).
    xs = jnp.zeros((bp, 2 * dp), jnp.bfloat16)
    xs = xs.at[:B, :d].set(x.astype(jnp.bfloat16))
    xs = xs.at[:B, dp:dp + d].set(s.astype(jnp.bfloat16))

    n_b, n_j = bp // tile_b, dp // tn

    # Grid: feature axis j OUTER, batch axis i INNER -> weight/bias index_maps
    # are invariant along the innermost axis, so the (2*dp, 3*tn) slab stays
    # VMEM-resident across batch tiles (no re-DMA).
    xs_spec = pl.BlockSpec((tile_b, 2 * dp), lambda j, i: (i, 0))
    w_spec = pl.BlockSpec((2 * dp, 3 * tn), lambda j, i: (0, j))
    b_spec = pl.BlockSpec((1, 3 * tn), lambda j, i: (0, j))
    out_spec = pl.BlockSpec((tile_b, tn), lambda j, i: (i, j))

    cost = pl.CostEstimate(
        flops=2 * bp * (2 * dp) * (3 * dp),          # one [bp,2dp]@[2dp,3dp] matmul
        transcendentals=3 * bp * dp,                 # 3 tanh per output element
        bytes_accessed=(bp * 2 * dp * 2              # fused [x|s] (bf16)
                        + 2 * dp * 3 * dp * 2        # fused weight slab (bf16)
                        + 3 * dp * 4                 # biases (f32)
                        + bp * dp * 4))              # output (f32)

    out_padded = pl.pallas_call(
        highway_kernel,
        out_shape=jax.ShapeDtypeStruct((bp, dp), jnp.float32),
        grid_spec=pltpu.PrefetchScalarGridSpec(
            num_scalar_prefetch=0,
            grid=(n_j, n_b),
            in_specs=[xs_spec, w_spec, b_spec],
            out_specs=out_spec,
        ),
        compiler_params=pltpu.CompilerParams(
            dimension_semantics=("parallel", "parallel"),
            vmem_limit_bytes=packed["vmem_limit"],
        ),
        cost_estimate=cost,
    )(xs, w_all, b_all)

    return out_padded[:B, :d]


# ----------------------------- init / reference ------------------------------


def init_params(key, d, init_bias=-1.0):
    # Deterministic "kaiming"-style init: N(0, sqrt(2/fan_in)); bias = -1.
    names = ["W_H", "W_T", "W_C", "R_H", "R_T", "R_C"]
    keys = jax.random.split(key, len(names))
    scale = jnp.sqrt(2.0 / d)
    params = {n: jax.random.normal(k, (d, d), jnp.float32) * scale
              for n, k in zip(names, keys)}
    for n in ["b_H", "b_T", "b_C"]:
        params[n] = jnp.full((1, d), init_bias, jnp.float32)
    return params


def highway_ref(x, s, p):
    # Reference matching the kernel's numerics: bf16 operands, f32 accumulation.
    r = lambda a: a.astype(jnp.bfloat16).astype(jnp.float32)
    xb, sb = r(x), r(s)
    pre_h = xb @ r(p["W_H"]) + sb @ r(p["R_H"]) + p["b_H"]
    pre_t = xb @ r(p["W_T"]) + sb @ r(p["R_T"]) + p["b_T"]
    pre_c = xb @ r(p["W_C"]) + sb @ r(p["R_C"]) + p["b_C"]
    return (jnp.tanh(pre_h) * jax.nn.sigmoid(pre_t)
            + sb * jax.nn.sigmoid(pre_c))


# ----------------------------- demo ------------------------------------------


if __name__ == "__main__":
    B, D = 16, 32  # small demo shapes (bp=16 -> single full-batch tile, tile_b=16)
    key = jax.random.PRNGKey(0)
    kx, ks, kp = jax.random.split(key, 3)
    x = jax.random.normal(kx, (B, D), jnp.float32)
    s = jax.random.normal(ks, (B, D), jnp.float32)

    params = init_params(kp, D, init_bias=-1.0)
    packed = pack_params(params, D)          # one-time weight packing (outside kernel)

    out = highway_block(x, s, packed)
    out = jax.block_until_ready(out)

    ref = highway_ref(x, s, params)
    assert out.shape == (B, D)
    assert jnp.allclose(out, ref, atol=1e-3, rtol=1e-3), "mismatch vs reference"
    print("KERNEL_OK")
</pallas_src>

<mosaic_0001>
module attributes {stable_mosaic.version = 11 : i64} {
  func.func @highway_kernel(%arg0: i32, %arg1: i32, %arg2: memref<16x256xbf16, #tpu.memory_space<vmem>>, %arg3: memref<256x384xbf16, #tpu.memory_space<vmem>>, %arg4: memref<1x384xf32, #tpu.memory_space<vmem>>, %arg5: memref<16x128xf32, #tpu.memory_space<vmem>>) attributes {dimension_semantics = [#tpu.dimension_semantics<parallel>, #tpu.dimension_semantics<parallel>], iteration_bounds = array<i64: 1, 1>, scalar_prefetch = 0 : i64, scratch_operands = 0 : i64, tpu.core_type = #tpu.core_type<tc>, window_params = [{transform_indices = @transform_0, window_bounds = array<i64: 16, 256>}, {transform_indices = @transform_1, window_bounds = array<i64: 256, 384>}, {transform_indices = @transform_2, window_bounds = array<i64: 1, 384>}, {transform_indices = @transform_3, window_bounds = array<i64: 16, 128>}]} {
    %c0 = arith.constant 0 : index
    %c0_0 = arith.constant 0 : index
    %0 = vector.load %arg2[%c0, %c0_0] : memref<16x256xbf16, #tpu.memory_space<vmem>>, vector<16x256xbf16>
    %c0_1 = arith.constant 0 : index
    %c0_2 = arith.constant 0 : index
    %1 = vector.load %arg3[%c0_1, %c0_2] : memref<256x384xbf16, #tpu.memory_space<vmem>>, vector<256x384xbf16>
    %cst = arith.constant dense<0.000000e+00> : vector<16x384xf32>
    %2 = tpu.matmul %0, %1, %cst {dimension_numbers = #tpu.dot_dimension_numbers<[1], [0], [0], [1], [0, 0, 1, 1], [], []>} : vector<16x256xbf16>, vector<256x384xbf16>, vector<16x384xf32> -> vector<16x384xf32>
    %c0_3 = arith.constant 0 : index
    %c0_4 = arith.constant 0 : index
    %3 = vector.load %arg4[%c0_3, %c0_4] : memref<1x384xf32, #tpu.memory_space<vmem>>, vector<1x384xf32>
    %4 = vector.broadcast %3 : vector<1x384xf32> to vector<16x384xf32>
    %5 = arith.addf %2, %4 : vector<16x384xf32>
    %6 = vector.extract_strided_slice %5 {offsets = [0, 0], sizes = [16, 128], strides = [1, 1]} : vector<16x384xf32> to vector<16x128xf32>
    %7 = math.tanh %6 : vector<16x128xf32>
    %8 = vector.extract_strided_slice %5 {offsets = [0, 128], sizes = [16, 128], strides = [1, 1]} : vector<16x384xf32> to vector<16x128xf32>
    %cst_5 = arith.constant 5.000000e-01 : f32
    %9 = vector.broadcast %cst_5 : f32 to vector<16x128xf32>
    %10 = arith.mulf %9, %8 : vector<16x128xf32>
    %11 = math.tanh %10 : vector<16x128xf32>
    %cst_6 = arith.constant 1.000000e+00 : f32
    %12 = vector.broadcast %cst_6 : f32 to vector<16x128xf32>
    %13 = arith.addf %11, %12 : vector<16x128xf32>
    %cst_7 = arith.constant 5.000000e-01 : f32
    %14 = vector.broadcast %cst_7 : f32 to vector<16x128xf32>
    %15 = arith.mulf %14, %13 : vector<16x128xf32>
    %16 = vector.extract_strided_slice %5 {offsets = [0, 256], sizes = [16, 128], strides = [1, 1]} : vector<16x384xf32> to vector<16x128xf32>
    %cst_8 = arith.constant 5.000000e-01 : f32
    %17 = vector.broadcast %cst_8 : f32 to vector<16x128xf32>
    %18 = arith.mulf %17, %16 : vector<16x128xf32>
    %19 = math.tanh %18 : vector<16x128xf32>
    %cst_9 = arith.constant 1.000000e+00 : f32
    %20 = vector.broadcast %cst_9 : f32 to vector<16x128xf32>
    %21 = arith.addf %19, %20 : vector<16x128xf32>
    %cst_10 = arith.constant 5.000000e-01 : f32
    %22 = vector.broadcast %cst_10 : f32 to vector<16x128xf32>
    %23 = arith.mulf %22, %21 : vector<16x128xf32>
    %c128_i32 = arith.constant 128 : i32
    %24 = arith.muli %arg0, %c128_i32 : i32
    %c128_i32_11 = arith.constant 128 : i32
    %25 = arith.addi %c128_i32_11, %24 : i32
    %26 = tpu.assume_multiple %25, 128 : i32
    %c0_12 = arith.constant 0 : index
    %27 = arith.index_cast %26 : i32 to index
    %28 = vector.load %arg2[%c0_12, %27] : memref<16x256xbf16, #tpu.memory_space<vmem>>, vector<16x128xbf16>
    %29 = arith.extf %28 : vector<16x128xbf16> to vector<16x128xf32>
    %30 = arith.mulf %7, %15 : vector<16x128xf32>
    %31 = arith.mulf %29, %23 : vector<16x128xf32>
    %32 = arith.addf %30, %31 : vector<16x128xf32>
    %c0_13 = arith.constant 0 : index
    %c0_14 = arith.constant 0 : index
    %33 = vector.load %arg5[%c0_13, %c0_14] : memref<16x128xf32, #tpu.memory_space<vmem>>, vector<16x128xf32>
    tpu.vector_store %arg5[%c0_13, %c0_14], %32 {strides = array<i32>} : memref<16x128xf32, #tpu.memory_space<vmem>>, vector<16x128xf32>,
    return
  }
  func.func @transform_0(%arg0: i32, %arg1: i32) -> (i32, i32) {
    %c0_i32 = arith.constant 0 : i32
    %c0_i32_0 = arith.constant 0 : i32
    return %arg1, %c0_i32 : i32, i32
  }
  func.func @transform_1(%arg0: i32, %arg1: i32) -> (i32, i32) {
    %c0_i32 = arith.constant 0 : i32
    %c0_i32_0 = arith.constant 0 : i32
    return %c0_i32, %arg0 : i32, i32
  }
  func.func @transform_2(%arg0: i32, %arg1: i32) -> (i32, i32) {
    %c0_i32 = arith.constant 0 : i32
    %c0_i32_0 = arith.constant 0 : i32
    return %c0_i32, %arg0 : i32, i32
  }
  func.func @transform_3(%arg0: i32, %arg1: i32) -> (i32, i32) {
    %c0_i32 = arith.constant 0 : i32
    return %arg1, %arg0 : i32, i32
  }
}

</mosaic_0001>

<llo_original>
// kernel: tpu_custom_call.1
$region0: #{tpu_custom_call.1}
  #allocation0 [shape = 'u32[]', space=smem, size = 0x4, offset = 0x4, fixed_abs, tag = 'smem constant byte address 0x4 - core index']
  #allocation1 [shape = 'u32[144,128]{1,0:T(1,128)}', space=vmem, size = 0x12000, scoped, tag = 'internal scratch']
  %s0 = inlined_call_operand.hbm [shape: bf16[16,256], index: 0, kind: input, shape index: {}]
  %s1 = inlined_call_operand.hbm [shape: bf16[256,384], index: 1, kind: input, shape index: {}]
  %s2 = inlined_call_operand.vmem [shape: f32[1,384], index: 2, kind: input, shape index: {}]
  %s3 = inlined_call_operand.hbm [shape: f32[16,128], index: 3, kind: output, shape index: {}]
  %s4 = sld [smem:[#allocation0]]
  $region30: #{tpu_custom_call.1} parent=0
    _
  %s6 = ssub.s32 1, %s4
  %s7 = scalar_select 0, %s6, %s4
  $region1: #{tpu_custom_call.1} parent=0
    #allocation2 [shape = 'u8[8192]{0}', space=vmem, size = 0x2000, scoped, tag = 'input window, operand 0, single buffered']
    #allocation3 [shape = 's32[1]{0}', space=sflag, size = 0x4, scoped, tag = 'scoped memory for tpu_custom_call.1']
    #allocation4 [shape = 's32[1]{0}', space=sflag, size = 0x4, scoped, tag = 'scoped memory for tpu_custom_call.1']
    #allocation5 [shape = 'u8[196608]{0}', space=vmem, size = 0x30000, scoped, tag = 'input window, operand 1, single buffered']
    #allocation6 [shape = 's32[1]{0}', space=sflag, size = 0x4, scoped, tag = 'scoped memory for tpu_custom_call.1']
    #allocation7 [shape = 'u8[8192]{0}', space=vmem, size = 0x2000, scoped, tag = 'output window, operand 0, single buffered']
    %8 = vsyncpa [#allocation3], 0
    %9 = vsyncpa [#allocation6], 0
    %10 = vsyncpa [#allocation4], 0
    // Predicated region
    $region2: #{tpu_custom_call.1} parent=1 // pred_check
      _
    $region3: #{tpu_custom_call.1} parent=1 // pred_check_branch
      %12 = sbr.rel (0) target = $region5
    $region4: #{tpu_custom_call.1} parent=1 // pred_region
      %s14 = ssub.s32 256, 256
      %15 = vsyncadd [#allocation3], %s14
      %s16 = sshll.u32 [#allocation2], 4
      %s17 = int_to_ptr.vmem [resolvable:$true] %s16
      %22 = dma.hbm_to_vmem [thread:$0]  %s0, 256, %s17, [#allocation3], 128, 128, 8
    $region5: #{tpu_custom_call.1} parent=1 // pred_fallthru
      _
    // Predicated region
    $region6: #{tpu_custom_call.1} parent=1 // pred_check
      _
    $region7: #{tpu_custom_call.1} parent=1 // pred_check_branch
      %24 = sbr.rel (0) target = $region9
    $region8: #{tpu_custom_call.1} parent=1 // pred_region
      %s26 = ssub.s32 6144, 6144
      %27 = vsyncadd [#allocation6], %s26
      %s28 = sshll.u32 [#allocation5], 4
      %s29 = int_to_ptr.vmem [resolvable:$true] %s28
      %34 = dma.hbm_to_vmem [thread:$0]  %s1, 6144, %s29, [#allocation6], 192, 192, 12
    $region9: #{tpu_custom_call.1} parent=1 // pred_fallthru
      _
    // Predicated region
    $region10: #{tpu_custom_call.1} parent=1 // pred_check
      _
    $region11: #{tpu_custom_call.1} parent=1 // pred_check_branch
      %36 = sbr.rel (0) target = $region13
    $region12: #{tpu_custom_call.1} parent=1 // pred_region
      _
    $region13: #{tpu_custom_call.1} parent=1 // pred_fallthru
      _
    // Predicated region
    $region14: #{tpu_custom_call.1} parent=1 // pred_check
      _
    $region15: #{tpu_custom_call.1} parent=1 // pred_check_branch
      %38 = sbr.rel (0) target = $region17
    $region16: #{tpu_custom_call.1} parent=1 // pred_region
      %39 = dma.done [#allocation3], 256
    $region17: #{tpu_custom_call.1} parent=1 // pred_fallthru
      _
    // Predicated region
    $region18: #{tpu_custom_call.1} parent=1 // pred_check
      _
    $region19: #{tpu_custom_call.1} parent=1 // pred_check_branch
      %41 = sbr.rel (0) target = $region21
    $region20: #{tpu_custom_call.1} parent=1 // pred_region
      %42 = dma.done [#allocation6], 6144
    $region21: #{tpu_custom_call.1} parent=1 // pred_fallthru
      _
    %v44 = vld [vmem:[#allocation2] sm:$0xff]
    %v45 = vld [vmem:[#allocation2 + $0x8] sm:$0xff]
    %v46 = vld [vmem:[#allocation5] sm:$0xff]
    %v47 = vld [vmem:[#allocation5 + $0x8] sm:$0xf]
    %v48 = vld [vmem:[#allocation5 + $0xc] sm:$0xff]
    %v49 = vld [vmem:[#allocation5 + $0x14] sm:$0xf]
    %v50 = vld [vmem:[#allocation5 + $0x18] sm:$0xff]
    %v51 = vld [vmem:[#allocation5 + $0x20] sm:$0xf]
    %v52 = vld [vmem:[#allocation5 + $0x24] sm:$0xff]
    %v53 = vld [vmem:[#allocation5 + $0x2c] sm:$0xf]
    %v54 = vld [vmem:[#allocation5 + $0x30] sm:$0xff]
    %v55 = vld [vmem:[#allocation5 + $0x38] sm:$0xf]
    %v56 = vld [vmem:[#allocation5 + $0x3c] sm:$0xff]
    %v57 = vld [vmem:[#allocation5 + $0x44] sm:$0xf]
    %v58 = vld [vmem:[#allocation5 + $0x48] sm:$0xff]
    %v59 = vld [vmem:[#allocation5 + $0x50] sm:$0xf]
    %v60 = vld [vmem:[#allocation5 + $0x54] sm:$0xff]
    %v61 = vld [vmem:[#allocation5 + $0x5c] sm:$0xf]
    %v62 = vld [vmem:[#allocation5 + $0x60] sm:$0xff]
    %v63 = vld [vmem:[#allocation5 + $0x68] sm:$0xf]
    %v64 = vld [vmem:[#allocation5 + $0x6c] sm:$0xff]
    %v65 = vld [vmem:[#allocation5 + $0x74] sm:$0xf]
    %v66 = vld [vmem:[#allocation5 + $0x78] sm:$0xff]
    %v67 = vld [vmem:[#allocation5 + $0x80] sm:$0xf]
    %v68 = vld [vmem:[#allocation5 + $0x84] sm:$0xff]
    %v69 = vld [vmem:[#allocation5 + $0x8c] sm:$0xf]
    %v70 = vld [vmem:[#allocation5 + $0x90] sm:$0xff]
    %v71 = vld [vmem:[#allocation5 + $0x98] sm:$0xf]
    %v72 = vld [vmem:[#allocation5 + $0x9c] sm:$0xff]
    %v73 = vld [vmem:[#allocation5 + $0xa4] sm:$0xf]
    %v74 = vld [vmem:[#allocation5 + $0xa8] sm:$0xff]
    %v75 = vld [vmem:[#allocation5 + $0xb0] sm:$0xf]
    %v76 = vld [vmem:[#allocation5 + $0xb4] sm:$0xff]
    %v77 = vld [vmem:[#allocation5 + $0xbc] sm:$0xf]
    %v78 = vld [vmem:[#allocation5 + $0xc0] sm:$0xff]
    %v79 = vld [vmem:[#allocation5 + $0xc8] sm:$0xf]
    %v80 = vld [vmem:[#allocation5 + $0xcc] sm:$0xff]
    %v81 = vld [vmem:[#allocation5 + $0xd4] sm:$0xf]
    %v82 = vld [vmem:[#allocation5 + $0xd8] sm:$0xff]
    %v83 = vld [vmem:[#allocation5 + $0xe0] sm:$0xf]
    %v84 = vld [vmem:[#allocation5 + $0xe4] sm:$0xff]
    %v85 = vld [vmem:[#allocation5 + $0xec] sm:$0xf]
    %v86 = vld [vmem:[#allocation5 + $0xf0] sm:$0xff]
    %v87 = vld [vmem:[#allocation5 + $0xf8] sm:$0xf]
    %v88 = vld [vmem:[#allocation5 + $0xfc] sm:$0xff]
    %v89 = vld [vmem:[#allocation5 + $0x104] sm:$0xf]
    %v90 = vld [vmem:[#allocation5 + $0x108] sm:$0xff]
    %v91 = vld [vmem:[#allocation5 + $0x110] sm:$0xf]
    %v92 = vld [vmem:[#allocation5 + $0x114] sm:$0xff]
    %v93 = vld [vmem:[#allocation5 + $0x11c] sm:$0xf]
    %v94 = vld [vmem:[#allocation5 + $0x120] sm:$0xff]
    %v95 = vld [vmem:[#allocation5 + $0x128] sm:$0xf]
    %v96 = vld [vmem:[#allocation5 + $0x12c] sm:$0xff]
    %v97 = vld [vmem:[#allocation5 + $0x134] sm:$0xf]
    %v98 = vld [vmem:[#allocation5 + $0x138] sm:$0xff]
    %v99 = vld [vmem:[#allocation5 + $0x140] sm:$0xf]
    %v100 = vld [vmem:[#allocation5 + $0x144] sm:$0xff]
    %v101 = vld [vmem:[#allocation5 + $0x14c] sm:$0xf]
    %v102 = vld [vmem:[#allocation5 + $0x150] sm:$0xff]
    %v103 = vld [vmem:[#allocation5 + $0x158] sm:$0xf]
    %v104 = vld [vmem:[#allocation5 + $0x15c] sm:$0xff]
    %v105 = vld [vmem:[#allocation5 + $0x164] sm:$0xf]
    %v106 = vld [vmem:[#allocation5 + $0x168] sm:$0xff]
    %v107 = vld [vmem:[#allocation5 + $0x170] sm:$0xf]
    %v108 = vld [vmem:[#allocation5 + $0x174] sm:$0xff]
    %v109 = vld [vmem:[#allocation5 + $0x17c] sm:$0xf]
    %v110 = vld [vmem:[%s2] sm:$0x7]
    %v112 = vlaneseq
    %v113 = vshrl.u32 %v112, 7
    %v114 = vsub.s32 0, %v113
    %v115 = vrot.slane %v110, %v114
    %v116 = vlaneseq
    %v117 = vshrl.u32 %v116, 7
    %v118 = vsub.s32 1, %v117
    %v119 = vrot.slane %v110, %v118
    %v120 = vlaneseq
    %v121 = vshrl.u32 %v120, 7
    %v122 = vsub.s32 2, %v121
    %v123 = vrot.slane %v110, %v122
    %v129 = vunpack.c.l.b16 %v44
    %v130 = vunpack.c.h.b16 %v44
    %v131 = vunpack.c.l.b16 %v45
    %v132 = vunpack.c.h.b16 %v45
    %v133 = vpack.c.b16 %v131, %v129
    %v134 = vpack.c.b16 %v132, %v130
    %v201 = vunpack.c.l.b16 %v46
    %v202 = vunpack.c.h.b16 %v46
    %v203 = vunpack.c.l.b16 %v47
    %v204 = vunpack.c.l.b16 %v48
    %v205 = vunpack.c.h.b16 %v48
    %v206 = vunpack.c.l.b16 %v49
    %v207 = vunpack.c.l.b16 %v50
    %v208 = vunpack.c.h.b16 %v50
    %v209 = vunpack.c.l.b16 %v51
    %v210 = vunpack.c.l.b16 %v52
    %v211 = vunpack.c.h.b16 %v52
    %v212 = vunpack.c.l.b16 %v53
    %v213 = vunpack.c.l.b16 %v54
    %v214 = vunpack.c.h.b16 %v54
    %v215 = vunpack.c.l.b16 %v55
    %v216 = vunpack.c.l.b16 %v56
    %v217 = vunpack.c.h.b16 %v56
    %v218 = vunpack.c.l.b16 %v57
    %v219 = vunpack.c.l.b16 %v58
    %v220 = vunpack.c.h.b16 %v58
    %v221 = vunpack.c.l.b16 %v59
    %v222 = vunpack.c.l.b16 %v60
    %v223 = vunpack.c.h.b16 %v60
    %v224 = vunpack.c.l.b16 %v61
    %v225 = vunpack.c.l.b16 %v62
    %v226 = vunpack.c.h.b16 %v62
    %v227 = vunpack.c.l.b16 %v63
    %v228 = vunpack.c.l.b16 %v64
    %v229 = vunpack.c.h.b16 %v64
    %v230 = vunpack.c.l.b16 %v65
    %v231 = vunpack.c.l.b16 %v66
    %v232 = vunpack.c.h.b16 %v66
    %v233 = vunpack.c.l.b16 %v67
    %v234 = vunpack.c.l.b16 %v68
    %v235 = vunpack.c.h.b16 %v68
    %v236 = vunpack.c.l.b16 %v69
    %v237 = vunpack.c.l.b16 %v70
    %v238 = vunpack.c.h.b16 %v70
    %v239 = vunpack.c.l.b16 %v71
    %v240 = vunpack.c.l.b16 %v72
    %v241 = vunpack.c.h.b16 %v72
    %v242 = vunpack.c.l.b16 %v73
    %v243 = vunpack.c.l.b16 %v74
    %v244 = vunpack.c.h.b16 %v74
    %v245 = vunpack.c.l.b16 %v75
    %v246 = vunpack.c.l.b16 %v76
    %v247 = vunpack.c.h.b16 %v76
    %v248 = vunpack.c.l.b16 %v77
    %v249 = vunpack.c.l.b16 %v78
    %v250 = vunpack.c.h.b16 %v78
    %v251 = vunpack.c.l.b16 %v79
    %v252 = vunpack.c.l.b16 %v80
    %v253 = vunpack.c.h.b16 %v80
    %v254 = vunpack.c.l.b16 %v81
    %v255 = vunpack.c.l.b16 %v82
    %v256 = vunpack.c.h.b16 %v82
    %v257 = vunpack.c.l.b16 %v83
    %v258 = vunpack.c.l.b16 %v84
    %v259 = vunpack.c.h.b16 %v84
    %v260 = vunpack.c.l.b16 %v85
    %v261 = vunpack.c.l.b16 %v86
    %v262 = vunpack.c.h.b16 %v86
    %v263 = vunpack.c.l.b16 %v87
    %v264 = vunpack.c.l.b16 %v88
    %v265 = vunpack.c.h.b16 %v88
    %v266 = vunpack.c.l.b16 %v89
    %v267 = vunpack.c.l.b16 %v90
    %v268 = vunpack.c.h.b16 %v90
    %v269 = vunpack.c.l.b16 %v91
    %v270 = vunpack.c.l.b16 %v92
    %v271 = vunpack.c.h.b16 %v92
    %v272 = vunpack.c.l.b16 %v93
    %v273 = vunpack.c.l.b16 %v94
    %v274 = vunpack.c.h.b16 %v94
    %v275 = vunpack.c.l.b16 %v95
    %v276 = vunpack.c.l.b16 %v96
    %v277 = vunpack.c.h.b16 %v96
    %v278 = vunpack.c.l.b16 %v97
    %v279 = vunpack.c.l.b16 %v98
    %v280 = vunpack.c.h.b16 %v98
    %v281 = vunpack.c.l.b16 %v99
    %v282 = vunpack.c.l.b16 %v100
    %v283 = vunpack.c.h.b16 %v100
    %v284 = vunpack.c.l.b16 %v101
    %v285 = vunpack.c.l.b16 %v102
    %v286 = vunpack.c.h.b16 %v102
    %v287 = vunpack.c.l.b16 %v103
    %v288 = vunpack.c.l.b16 %v104
    %v289 = vunpack.c.h.b16 %v104
    %v290 = vunpack.c.l.b16 %v105
    %v291 = vunpack.c.l.b16 %v106
    %v292 = vunpack.c.h.b16 %v106
    %v293 = vunpack.c.l.b16 %v107
    %v294 = vunpack.c.l.b16 %v108
    %v295 = vunpack.c.h.b16 %v108
    %v296 = vunpack.c.l.b16 %v109
    %v297 = vpack.c.b16 %v204, %v201
    %v298 = vpack.c.b16 %v205, %v202
    %v299 = vpack.c.b16 %v206, %v203
    %v300 = vpack.c.b16 %v210, %v207
    %v301 = vpack.c.b16 %v211, %v208
    %v302 = vpack.c.b16 %v212, %v209
    %v303 = vpack.c.b16 %v216, %v213
    %v304 = vpack.c.b16 %v217, %v214
    %v305 = vpack.c.b16 %v218, %v215
    %v306 = vpack.c.b16 %v222, %v219
    %v307 = vpack.c.b16 %v223, %v220
    %v308 = vpack.c.b16 %v224, %v221
    %v309 = vpack.c.b16 %v228, %v225
    %v310 = vpack.c.b16 %v229, %v226
    %v311 = vpack.c.b16 %v230, %v227
    %v312 = vpack.c.b16 %v234, %v231
    %v313 = vpack.c.b16 %v235, %v232
    %v314 = vpack.c.b16 %v236, %v233
    %v315 = vpack.c.b16 %v240, %v237
    %v316 = vpack.c.b16 %v241, %v238
    %v317 = vpack.c.b16 %v242, %v239
    %v318 = vpack.c.b16 %v246, %v243
    %v319 = vpack.c.b16 %v247, %v244
    %v320 = vpack.c.b16 %v248, %v245
    %v321 = vpack.c.b16 %v252, %v249
    %v322 = vpack.c.b16 %v253, %v250
    %v323 = vpack.c.b16 %v254, %v251
    %v324 = vpack.c.b16 %v258, %v255
    %v325 = vpack.c.b16 %v259, %v256
    %v326 = vpack.c.b16 %v260, %v257
    %v327 = vpack.c.b16 %v264, %v261
    %v328 = vpack.c.b16 %v265, %v262
    %v329 = vpack.c.b16 %v266, %v263
    %v330 = vpack.c.b16 %v270, %v267
    %v331 = vpack.c.b16 %v271, %v268
    %v332 = vpack.c.b16 %v272, %v269
    %v333 = vpack.c.b16 %v276, %v273
    %v334 = vpack.c.b16 %v277, %v274
    %v335 = vpack.c.b16 %v278, %v275
    %v336 = vpack.c.b16 %v282, %v279
    %v337 = vpack.c.b16 %v283, %v280
    %v338 = vpack.c.b16 %v284, %v281
    %v339 = vpack.c.b16 %v288, %v285
    %v340 = vpack.c.b16 %v289, %v286
    %v341 = vpack.c.b16 %v290, %v287
    %v342 = vpack.c.b16 %v294, %v291
    %v343 = vpack.c.b16 %v295, %v292
    %v344 = vpack.c.b16 %v296, %v293
    %393 = vmatprep.subr.bf16.mxu0 %v298
    %394 = vmatpush1.bf16.msra.mxu0 %v297
    %395 = vmatprep.subr.bf16.mxu0 %v301
    %396 = vmatpush1.bf16.msra.mxu0 %v300
    %397 = vmatprep.subr.bf16.mxu0 %v304
    %398 = vmatpush1.bf16.msra.mxu0 %v303
    %399 = vmatprep.subr.bf16.mxu0 %v307
    %400 = vmatpush1.bf16.msra.mxu0 %v306
    %401 = vmatprep.subr.bf16.mxu0 %v310
    %402 = vmatpush1.bf16.msra.mxu0 %v309
    %403 = vmatprep.subr.bf16.mxu0 %v313
    %404 = vmatpush1.bf16.msra.mxu0 %v312
    %405 = vmatprep.subr.bf16.mxu0 %v316
    %406 = vmatpush1.bf16.msra.mxu0 %v315
    %407 = vmatprep.subr.bf16.mxu0 %v319
    %408 = vmatpush1.bf16.msra.mxu0 %v318
    %409 = vmatprep.subr.bf16.mxu0 %v322
    %410 = vmatpush1.bf16.msra.mxu0 %v321
    %411 = vmatprep.subr.bf16.mxu0 %v325
    %412 = vmatpush1.bf16.msra.mxu0 %v324
    %413 = vmatprep.subr.bf16.mxu0 %v328
    %414 = vmatpush1.bf16.msra.mxu0 %v327
    %415 = vmatprep.subr.bf16.mxu0 %v331
    %416 = vmatpush1.bf16.msra.mxu0 %v330
    %417 = vmatprep.subr.bf16.mxu0 %v334
    %418 = vmatpush1.bf16.msra.mxu0 %v333
    %419 = vmatprep.subr.bf16.mxu0 %v337
    %420 = vmatpush1.bf16.msra.mxu0 %v336
    %421 = vmatprep.subr.bf16.mxu0 %v340
    %422 = vmatpush1.bf16.msra.mxu0 %v339
    %423 = vmatprep.subr.bf16.mxu0 %v343
    %424 = vmatpush1.bf16.msra.mxu0 %v342
    %425 = vmatprep.mubr.bf16.mxu0 %v134
    %426 = vmatmul.mubr.bf16.gmra.mrb[0].mxu0 %v133
    %v427 = vpop.f32.mrb[0].mxu0
    %v428 = vadd.f32 %v115, %v427
    %v429 = vpop.f32.mrb[0].mxu0
    %v430 = vadd.f32 %v119, %v429
    %v431 = vpop.f32.mrb[0].mxu0
    %v432 = vadd.f32 %v115, %v431
    %v433 = vpop.f32.mrb[0].mxu0
    %v434 = vadd.f32 %v119, %v433
    %435 = vdwg.mxu0
    %436 = vmatprep.subr.bf16.mxu0 0
    %437 = vmatpush1.bf16.msra.mxu0 %v299
    %438 = vmatprep.subr.bf16.mxu0 0
    %439 = vmatpush1.bf16.msra.mxu0 %v302
    %440 = vmatprep.subr.bf16.mxu0 0
    %441 = vmatpush1.bf16.msra.mxu0 %v305
    %442 = vmatprep.subr.bf16.mxu0 0
    %443 = vmatpush1.bf16.msra.mxu0 %v308
    %444 = vmatprep.subr.bf16.mxu0 0
    %445 = vmatpush1.bf16.msra.mxu0 %v311
    %446 = vmatprep.subr.bf16.mxu0 0
    %447 = vmatpush1.bf16.msra.mxu0 %v314
    %448 = vmatprep.subr.bf16.mxu0 0
    %449 = vmatpush1.bf16.msra.mxu0 %v317
    %450 = vmatprep.subr.bf16.mxu0 0
    %451 = vmatpush1.bf16.msra.mxu0 %v320
    %452 = vmatprep.subr.bf16.mxu0 0
    %453 = vmatpush1.bf16.msra.mxu0 %v323
    %454 = vmatprep.subr.bf16.mxu0 0
    %455 = vmatpush1.bf16.msra.mxu0 %v326
    %456 = vmatprep.subr.bf16.mxu0 0
    %457 = vmatpush1.bf16.msra.mxu0 %v329
    %458 = vmatprep.subr.bf16.mxu0 0
    %459 = vmatpush1.bf16.msra.mxu0 %v332
    %460 = vmatprep.subr.bf16.mxu0 0
    %461 = vmatpush1.bf16.msra.mxu0 %v335
    %462 = vmatprep.subr.bf16.mxu0 0
    %463 = vmatpush1.bf16.msra.mxu0 %v338
    %464 = vmatprep.subr.bf16.mxu0 0
    %465 = vmatpush1.bf16.msra.mxu0 %v341
    %466 = vmatprep.subr.bf16.mxu0 0
    %467 = vmatpush1.bf16.msra.mxu0 %v344
    %468 = vmatprep.mubr.bf16.mxu0 %v134
    %469 = vmatmul.mubr.bf16.gmra.mrb[0].mxu0 %v133
    %v470 = vpop.f32.mrb[0].mxu0
    %v471 = vadd.f32 %v123, %v470
    %v472 = vpop.f32.mrb[0].mxu0
    %v473 = vpop.f32.mrb[0].mxu0
    %v474 = vadd.f32 %v123, %v473
    %v475 = vpop.f32.mrb[0].mxu0
    %476 = vdwg.mxu0
    %v477 = vtanh.pop %v428
    %v478 = vtanh.pop %v432
    %v479 = vmul.f32 %v430, 0.5
    %v480 = vmul.f32 %v434, 0.5
    %v481 = vtanh.pop %v479
    %v482 = vtanh.pop %v480
    %v483 = vadd.f32 %v481, 1.0
    %v484 = vadd.f32 %v482, 1.0
    %v485 = vmul.f32 %v483, 0.5
    %v486 = vmul.f32 %v484, 0.5
    %v487 = vmul.f32 %v471, 0.5
    %v488 = vmul.f32 %v474, 0.5
    %v489 = vtanh.pop %v487
    %v490 = vtanh.pop %v488
    %v491 = vadd.f32 %v489, 1.0
    %v492 = vadd.f32 %v490, 1.0
    %v493 = vmul.f32 %v491, 0.5
    %v494 = vmul.f32 %v492, 0.5
    %s495 = smul.u32 0, 128
    %s496 = sadd.s32 %s495, 128
    %s497 = sshra.s32 %s496, 7
    %s498 = sand.u32 %s496, 127
    %s499 = smul.addr %s497, 4
    %s500 = scalar_lea.vmem [#allocation2], %s499
    %v501 = vld [vmem:[%s500] sm:$0xf]
    %v502 = vld [vmem:[%s500 + $0x8] sm:$0xf]
    %v503 = vunpack.c.l.bf16 %v501
    %v504 = vunpack.c.l.bf16 %v502
    %v505 = vmul.f32 %v477, %v485
    %v506 = vmul.f32 %v478, %v486
    %v507 = vmul.f32 %v503, %v493
    %v508 = vmul.f32 %v504, %v494
    %v509 = vadd.f32 %v505, %v507
    %v510 = vadd.f32 %v506, %v508
    %511 = vst [vmem:[#allocation7] sm:$0xff] %v509
    %512 = vst [vmem:[#allocation7 + $0x8] sm:$0xff] %v510
    // Predicated region
    $region22: #{tpu_custom_call.1} parent=1 // pred_check
      _
    $region23: #{tpu_custom_call.1} parent=1 // pred_check_branch
      %514 = sbr.rel (0) target = $region25
    $region24: #{tpu_custom_call.1} parent=1 // pred_region
      %s516 = ssub.s32 256, 256
      %517 = vsyncadd [#allocation4], %s516
      %s518 = sshll.u32 [#allocation7], 4
      %s519 = int_to_ptr.vmem [resolvable:$true] %s518
      %524 = dma.vmem_to_hbm [thread:$0]  %s519, 256, %s3, [#allocation4], 128, 128, 8
    $region25: #{tpu_custom_call.1} parent=1 // pred_fallthru
      _
    // Predicated region
    $region26: #{tpu_custom_call.1} parent=1 // pred_check
      _
    $region27: #{tpu_custom_call.1} parent=1 // pred_check_branch
      %526 = sbr.rel (0) target = $region29
    $region28: #{tpu_custom_call.1} parent=1 // pred_region
      %527 = dma.done [#allocation4], 256
    $region29: #{tpu_custom_call.1} parent=1 // pred_fallthru
      _
    %528 = vsyncpa [#allocation3], 1
    %529 = vsyncpa [#allocation6], 1
    %530 = vsyncpa [#allocation4], 1

</llo_original>
